<compile_context>
chip_gen: v5e
topology: v5e:2x2
jax: 0.10.0
libtpu: 0.0.40
codegen_flags: <defaults>
</compile_context>

<pallas_src>
import jax
import jax.numpy as jnp
from jax.experimental import pallas as pl
from jax.experimental.pallas import tpu as pltpu

FC1, FC2, FC3, FC4 = 512, 256, 64, 16
LANE = 128
ROW_ALIGN = 16  # sublane alignment covering bf16 (16,128) and f32 (8,128) tiles


def _round_up(n, m):
    return ((n + m - 1) // m) * m


def _pad_cols(a, n):
    return jnp.pad(a, ((0, 0), (0, n - a.shape[1])))


def _pad_rows(a, n):
    return jnp.pad(a, ((0, n - a.shape[0]), (0, 0)))


def actor_kernel(x_ref,
                 w1_ref, b1_ref,
                 w2_ref, b2_ref,
                 w3_ref, b3_ref,
                 w4_ref, b4_ref,
                 w5_ref, b5_ref,
                 o_ref):
    cdt = w1_ref.dtype  # matmul operand dtype (bf16); accumulate + act in f32
    # fc1 + ReLU (x is DMA'd as f32, cast to bf16 here -- VPU is otherwise idle)
    x = x_ref[...].astype(cdt)
    h = jnp.dot(x, w1_ref[...], preferred_element_type=jnp.float32)
    h = jnp.maximum(h + b1_ref[...], 0.0)
    # fc2 + ReLU
    h = jnp.dot(h.astype(cdt), w2_ref[...], preferred_element_type=jnp.float32)
    h = jnp.maximum(h + b2_ref[...], 0.0)
    # fc3 + ReLU (lane-padded to 128)
    h = jnp.dot(h.astype(cdt), w3_ref[...], preferred_element_type=jnp.float32)
    h = jnp.maximum(h + b3_ref[...], 0.0)
    # fc4 + ReLU (lane-padded to 128)
    h = jnp.dot(h.astype(cdt), w4_ref[...], preferred_element_type=jnp.float32)
    h = jnp.maximum(h + b4_ref[...], 0.0)
    # fc5 + tanh (output lane-padded to 128; wrapper slices the real actions)
    h = jnp.dot(h.astype(cdt), w5_ref[...], preferred_element_type=jnp.float32)
    o_ref[...] = jnp.tanh(h + b5_ref[...]).astype(o_ref.dtype)


def prepare_actor_params(params, compute_dtype=jnp.bfloat16):
    """One-time packing: lane-pad narrow dims to 128 and cast weights to bf16.

    params: flat list [w1,b1,...,w5,b5]; weights (in_features, out_features),
    biases (1, out_features), all f32. Zero padding is exact: relu(0+0)=0
    multiplied by zero-padded weight rows contributes 0.
    """
    w1, b1, w2, b2, w3, b3, w4, b4, w5, b5 = params
    action_size = w5.shape[1]

    fc3p = _round_up(max(w3.shape[1], LANE), LANE)
    fc4p = _round_up(max(w4.shape[1], LANE), LANE)
    outp = _round_up(max(action_size, LANE), LANE)

    w3p, b3p = _pad_cols(w3, fc3p), _pad_cols(b3, fc3p)
    w4p, b4p = _pad_cols(_pad_rows(w4, fc3p), fc4p), _pad_cols(b4, fc4p)
    w5p, b5p = _pad_cols(_pad_rows(w5, fc4p), outp), _pad_cols(b5, outp)

    cdt = compute_dtype
    weights = [w1.astype(cdt), w2.astype(cdt), w3p.astype(cdt),
               w4p.astype(cdt), w5p.astype(cdt)]
    # biases stay f32: added to the f32 accumulator
    biases = [b1.astype(jnp.float32), b2.astype(jnp.float32),
              b3p.astype(jnp.float32), b4p.astype(jnp.float32),
              b5p.astype(jnp.float32)]
    return {"weights": weights, "biases": biases,
            "action_size": int(action_size), "out_padded": int(outp)}


def _choose_tm(B, tm):
    """Batch tile: as large as possible (amortize per-step overhead, fill the
    256-wide MXU M dim), but >=2 grid steps when the batch allows so both v7x
    TensorCores get work on the "parallel" axis."""
    tm = max(ROW_ALIGN, (tm // ROW_ALIGN) * ROW_ALIGN)
    if B < 2 * ROW_ALIGN:
        # too small for two aligned tiles: single block == full batch
        # (full-array blocks are exempt from the (16,128) alignment rule)
        return min(B, tm)
    return min(tm, _round_up(pl.cdiv(B, 2), ROW_ALIGN))


def actor_forward(x, packed, *, tm=512, out_dtype=jnp.bfloat16):
    """x: (B, state_size) f32. packed: output of prepare_actor_params.

    Returns (B, action_size) f32.
    """
    B, S = x.shape
    weights, biases = packed["weights"], packed["biases"]
    action_size, outp = packed["action_size"], packed["out_padded"]

    tm_eff = _choose_tm(B, tm)
    grid = (pl.cdiv(B, tm_eff),)  # ragged last block: OOB rows masked by Pallas

    def resident_spec(a):  # weights/biases: same block every step -> no re-DMA
        return pl.BlockSpec(a.shape, lambda i: (0, 0))

    in_specs = [pl.BlockSpec((tm_eff, S), lambda i: (i, 0))]
    operands = [x]
    for w, b in zip(weights, biases):
        in_specs += [resident_spec(w), resident_spec(b)]
        operands += [w, b]

    out = pl.pallas_call(
        actor_kernel,
        out_shape=jax.ShapeDtypeStruct((B, outp), out_dtype),
        grid_spec=pl.GridSpec(
            grid=grid,
            in_specs=in_specs,
            out_specs=pl.BlockSpec((tm_eff, outp), lambda i: (i, 0)),
        ),
        compiler_params=pltpu.CompilerParams(
            dimension_semantics=("parallel",)),
    )(*operands)
    return out[:, :action_size].astype(jnp.float32)


def init_actor_params(key, state_size, action_size):
    """Deterministic init mirroring the PyTorch module's reset_parameters.

    layer_init uses weight.size()[0] == out_features, so weight lim =
    1/sqrt(out_features) for fc1-4 and (-0.003, 0.003) for fc5; biases keep
    PyTorch's default Linear init lim = 1/sqrt(in_features) (the module never
    overrides them).
    """
    dims = [state_size, FC1, FC2, FC3, FC4, action_size]
    params = []
    keys = jax.random.split(key, 10)
    for i in range(5):
        fan_in, fan_out = dims[i], dims[i + 1]
        if i < 4:
            w_lim = 1.0 / jnp.sqrt(jnp.float32(fan_out))
        else:
            w_lim = jnp.float32(0.003)
        b_lim = 1.0 / jnp.sqrt(jnp.float32(fan_in))
        # stored transposed vs PyTorch: (in_features, out_features)
        w = jax.random.uniform(keys[2 * i], (fan_in, fan_out),
                               dtype=jnp.float32, minval=-w_lim, maxval=w_lim)
        b = jax.random.uniform(keys[2 * i + 1], (1, fan_out),
                               dtype=jnp.float32, minval=-b_lim, maxval=b_lim)
        params += [w, b]
    return params


def actor_forward_ref(x, params, compute_dtype=jnp.bfloat16):
    """Pure-JAX reference using the same matmul precision path as the kernel
    (f32 activations / tanh; the kernel additionally rounds its store to bf16)."""
    h = x
    for i in range(4):
        w, b = params[2 * i], params[2 * i + 1]
        h = jnp.dot(h.astype(compute_dtype), w.astype(compute_dtype),
                    preferred_element_type=jnp.float32) + b
        h = jnp.maximum(h, 0.0)
    w, b = params[8], params[9]
    h = jnp.dot(h.astype(compute_dtype), w.astype(compute_dtype),
                preferred_element_type=jnp.float32) + b
    return jnp.tanh(h)


if __name__ == "__main__":
    state_size, action_size, batch = 32, 4, 8
    key = jax.random.PRNGKey(0)
    k_x, k_p, k_x2 = jax.random.split(key, 3)
    params = init_actor_params(k_p, state_size, action_size)
    packed = prepare_actor_params(params)   # one-time padding/bf16 packing

    # Small, latency-bound case (single grid step, full-array blocks).
    x = jax.random.normal(k_x, (batch, state_size), dtype=jnp.float32)
    out = actor_forward(x, packed)
    jax.block_until_ready(out)
    ref_bf16 = actor_forward_ref(x, params)                       # matched path
    ref_f32 = actor_forward_ref(x, params, compute_dtype=jnp.float32)
    assert out.shape == (batch, action_size)
    assert jnp.allclose(out, ref_bf16, atol=1e-2, rtol=1e-2)      # bf16 store
    assert jnp.allclose(out, ref_f32, atol=3e-2, rtol=3e-2)

    # Larger batch: 2 grid steps (megacore split) + ragged last block masking.
    x2 = jax.random.normal(k_x2, (300, state_size), dtype=jnp.float32)
    out2 = actor_forward(x2, packed)
    jax.block_until_ready(out2)
    ref2 = actor_forward_ref(x2, params)
    assert out2.shape == (300, action_size)
    assert jnp.allclose(out2, ref2, atol=1e-2, rtol=1e-2)

    print("KERNEL_OK")
</pallas_src>

<mosaic_0001>
module attributes {stable_mosaic.version = 11 : i64} {
  func.func @actor_kernel(%arg0: i32, %arg1: memref<8x32xf32, #tpu.memory_space<vmem>>, %arg2: memref<32x512xbf16, #tpu.memory_space<vmem>>, %arg3: memref<1x512xf32, #tpu.memory_space<vmem>>, %arg4: memref<512x256xbf16, #tpu.memory_space<vmem>>, %arg5: memref<1x256xf32, #tpu.memory_space<vmem>>, %arg6: memref<256x128xbf16, #tpu.memory_space<vmem>>, %arg7: memref<1x128xf32, #tpu.memory_space<vmem>>, %arg8: memref<128x128xbf16, #tpu.memory_space<vmem>>, %arg9: memref<1x128xf32, #tpu.memory_space<vmem>>, %arg10: memref<128x128xbf16, #tpu.memory_space<vmem>>, %arg11: memref<1x128xf32, #tpu.memory_space<vmem>>, %arg12: memref<8x128xbf16, #tpu.memory_space<vmem>>) attributes {dimension_semantics = [#tpu.dimension_semantics<parallel>], iteration_bounds = array<i64: 1>, scalar_prefetch = 0 : i64, scratch_operands = 0 : i64, tpu.core_type = #tpu.core_type<tc>, window_params = [{transform_indices = @transform_0, window_bounds = array<i64: 8, 32>}, {pipeline_mode = #tpu.pipeline_mode<synchronous>, transform_indices = @transform_1, window_bounds = array<i64: 32, 512>}, {pipeline_mode = #tpu.pipeline_mode<synchronous>, transform_indices = @transform_2, window_bounds = array<i64: 1, 512>}, {pipeline_mode = #tpu.pipeline_mode<synchronous>, transform_indices = @transform_3, window_bounds = array<i64: 512, 256>}, {pipeline_mode = #tpu.pipeline_mode<synchronous>, transform_indices = @transform_4, window_bounds = array<i64: 1, 256>}, {pipeline_mode = #tpu.pipeline_mode<synchronous>, transform_indices = @transform_5, window_bounds = array<i64: 256, 128>}, {pipeline_mode = #tpu.pipeline_mode<synchronous>, transform_indices = @transform_6, window_bounds = array<i64: 1, 128>}, {pipeline_mode = #tpu.pipeline_mode<synchronous>, transform_indices = @transform_7, window_bounds = array<i64: 128, 128>}, {pipeline_mode = #tpu.pipeline_mode<synchronous>, transform_indices = @transform_8, window_bounds = array<i64: 1, 128>}, {pipeline_mode = #tpu.pipeline_mode<synchronous>, transform_indices = @transform_9, window_bounds = array<i64: 128, 128>}, {pipeline_mode = #tpu.pipeline_mode<synchronous>, transform_indices = @transform_10, window_bounds = array<i64: 1, 128>}, {transform_indices = @transform_11, window_bounds = array<i64: 8, 128>}]} {
    %c0 = arith.constant 0 : index
    %c0_0 = arith.constant 0 : index
    %0 = vector.load %arg1[%c0, %c0_0] : memref<8x32xf32, #tpu.memory_space<vmem>>, vector<8x32xf32>
    %1 = arith.truncf %0 : vector<8x32xf32> to vector<8x32xbf16>
    %c0_1 = arith.constant 0 : index
    %c0_2 = arith.constant 0 : index
    %2 = vector.load %arg2[%c0_1, %c0_2] : memref<32x512xbf16, #tpu.memory_space<vmem>>, vector<32x512xbf16>
    %cst = arith.constant dense<0.000000e+00> : vector<8x512xf32>
    %3 = tpu.matmul %1, %2, %cst {dimension_numbers = #tpu.dot_dimension_numbers<[1], [0], [0], [1], [0, 0, 1, 1], [], []>} : vector<8x32xbf16>, vector<32x512xbf16>, vector<8x512xf32> -> vector<8x512xf32>
    %c0_3 = arith.constant 0 : index
    %c0_4 = arith.constant 0 : index
    %4 = vector.load %arg3[%c0_3, %c0_4] : memref<1x512xf32, #tpu.memory_space<vmem>>, vector<1x512xf32>
    %5 = vector.broadcast %4 : vector<1x512xf32> to vector<8x512xf32>
    %6 = arith.addf %3, %5 : vector<8x512xf32>
    %cst_5 = arith.constant 0.000000e+00 : f32
    %7 = vector.broadcast %cst_5 : f32 to vector<8x512xf32>
    %8 = arith.maximumf %6, %7 : vector<8x512xf32>
    %9 = arith.truncf %8 : vector<8x512xf32> to vector<8x512xbf16>
    %c0_6 = arith.constant 0 : index
    %c0_7 = arith.constant 0 : index
    %10 = vector.load %arg4[%c0_6, %c0_7] : memref<512x256xbf16, #tpu.memory_space<vmem>>, vector<512x256xbf16>
    %cst_8 = arith.constant dense<0.000000e+00> : vector<8x256xf32>
    %11 = tpu.matmul %9, %10, %cst_8 {dimension_numbers = #tpu.dot_dimension_numbers<[1], [0], [0], [1], [0, 0, 1, 1], [], []>} : vector<8x512xbf16>, vector<512x256xbf16>, vector<8x256xf32> -> vector<8x256xf32>
    %c0_9 = arith.constant 0 : index
    %c0_10 = arith.constant 0 : index
    %12 = vector.load %arg5[%c0_9, %c0_10] : memref<1x256xf32, #tpu.memory_space<vmem>>, vector<1x256xf32>
    %13 = vector.broadcast %12 : vector<1x256xf32> to vector<8x256xf32>
    %14 = arith.addf %11, %13 : vector<8x256xf32>
    %cst_11 = arith.constant 0.000000e+00 : f32
    %15 = vector.broadcast %cst_11 : f32 to vector<8x256xf32>
    %16 = arith.maximumf %14, %15 : vector<8x256xf32>
    %17 = arith.truncf %16 : vector<8x256xf32> to vector<8x256xbf16>
    %c0_12 = arith.constant 0 : index
    %c0_13 = arith.constant 0 : index
    %18 = vector.load %arg6[%c0_12, %c0_13] : memref<256x128xbf16, #tpu.memory_space<vmem>>, vector<256x128xbf16>
    %cst_14 = arith.constant dense<0.000000e+00> : vector<8x128xf32>
    %19 = tpu.matmul %17, %18, %cst_14 {dimension_numbers = #tpu.dot_dimension_numbers<[1], [0], [0], [1], [0, 0, 1, 1], [], []>} : vector<8x256xbf16>, vector<256x128xbf16>, vector<8x128xf32> -> vector<8x128xf32>
    %c0_15 = arith.constant 0 : index
    %c0_16 = arith.constant 0 : index
    %20 = vector.load %arg7[%c0_15, %c0_16] : memref<1x128xf32, #tpu.memory_space<vmem>>, vector<1x128xf32>
    %21 = vector.broadcast %20 : vector<1x128xf32> to vector<8x128xf32>
    %22 = arith.addf %19, %21 : vector<8x128xf32>
    %cst_17 = arith.constant 0.000000e+00 : f32
    %23 = vector.broadcast %cst_17 : f32 to vector<8x128xf32>
    %24 = arith.maximumf %22, %23 : vector<8x128xf32>
    %25 = arith.truncf %24 : vector<8x128xf32> to vector<8x128xbf16>
    %c0_18 = arith.constant 0 : index
    %c0_19 = arith.constant 0 : index
    %26 = vector.load %arg8[%c0_18, %c0_19] : memref<128x128xbf16, #tpu.memory_space<vmem>>, vector<128x128xbf16>
    %cst_20 = arith.constant dense<0.000000e+00> : vector<8x128xf32>
    %27 = tpu.matmul %25, %26, %cst_20 {dimension_numbers = #tpu.dot_dimension_numbers<[1], [0], [0], [1], [0, 0, 1, 1], [], []>} : vector<8x128xbf16>, vector<128x128xbf16>, vector<8x128xf32> -> vector<8x128xf32>
    %c0_21 = arith.constant 0 : index
    %c0_22 = arith.constant 0 : index
    %28 = vector.load %arg9[%c0_21, %c0_22] : memref<1x128xf32, #tpu.memory_space<vmem>>, vector<1x128xf32>
    %29 = vector.broadcast %28 : vector<1x128xf32> to vector<8x128xf32>
    %30 = arith.addf %27, %29 : vector<8x128xf32>
    %cst_23 = arith.constant 0.000000e+00 : f32
    %31 = vector.broadcast %cst_23 : f32 to vector<8x128xf32>
    %32 = arith.maximumf %30, %31 : vector<8x128xf32>
    %33 = arith.truncf %32 : vector<8x128xf32> to vector<8x128xbf16>
    %c0_24 = arith.constant 0 : index
    %c0_25 = arith.constant 0 : index
    %34 = vector.load %arg10[%c0_24, %c0_25] : memref<128x128xbf16, #tpu.memory_space<vmem>>, vector<128x128xbf16>
    %cst_26 = arith.constant dense<0.000000e+00> : vector<8x128xf32>
    %35 = tpu.matmul %33, %34, %cst_26 {dimension_numbers = #tpu.dot_dimension_numbers<[1], [0], [0], [1], [0, 0, 1, 1], [], []>} : vector<8x128xbf16>, vector<128x128xbf16>, vector<8x128xf32> -> vector<8x128xf32>
    %c0_27 = arith.constant 0 : index
    %c0_28 = arith.constant 0 : index
    %36 = vector.load %arg11[%c0_27, %c0_28] : memref<1x128xf32, #tpu.memory_space<vmem>>, vector<1x128xf32>
    %37 = vector.broadcast %36 : vector<1x128xf32> to vector<8x128xf32>
    %38 = arith.addf %35, %37 : vector<8x128xf32>
    %39 = math.tanh %38 : vector<8x128xf32>
    %40 = arith.truncf %39 : vector<8x128xf32> to vector<8x128xbf16>
    %c0_29 = arith.constant 0 : index
    %c0_30 = arith.constant 0 : index
    %41 = vector.load %arg12[%c0_29, %c0_30] : memref<8x128xbf16, #tpu.memory_space<vmem>>, vector<8x128xbf16>
    tpu.vector_store %arg12[%c0_29, %c0_30], %40 {strides = array<i32>} : memref<8x128xbf16, #tpu.memory_space<vmem>>, vector<8x128xbf16>,
    return
  }
  func.func @transform_0(%arg0: i32) -> (i32, i32) {
    %c0_i32 = arith.constant 0 : i32
    %c0_i32_0 = arith.constant 0 : i32
    return %arg0, %c0_i32 : i32, i32
  }
  func.func @transform_1(%arg0: i32) -> (i32, i32) {
    %c0_i32 = arith.constant 0 : i32
    %c0_i32_0 = arith.constant 0 : i32
    %c0_i32_1 = arith.constant 0 : i32
    return %c0_i32, %c0_i32_0 : i32, i32
  }
  func.func @transform_2(%arg0: i32) -> (i32, i32) {
    %c0_i32 = arith.constant 0 : i32
    %c0_i32_0 = arith.constant 0 : i32
    %c0_i32_1 = arith.constant 0 : i32
    return %c0_i32, %c0_i32_0 : i32, i32
  }
  func.func @transform_3(%arg0: i32) -> (i32, i32) {
    %c0_i32 = arith.constant 0 : i32
    %c0_i32_0 = arith.constant 0 : i32
    %c0_i32_1 = arith.constant 0 : i32
    return %c0_i32, %c0_i32_0 : i32, i32
  }
  func.func @transform_4(%arg0: i32) -> (i32, i32) {
    %c0_i32 = arith.constant 0 : i32
    %c0_i32_0 = arith.constant 0 : i32
    %c0_i32_1 = arith.constant 0 : i32
    return %c0_i32, %c0_i32_0 : i32, i32
  }
  func.func @transform_5(%arg0: i32) -> (i32, i32) {
    %c0_i32 = arith.constant 0 : i32
    %c0_i32_0 = arith.constant 0 : i32
    %c0_i32_1 = arith.constant 0 : i32
    return %c0_i32, %c0_i32_0 : i32, i32
  }
  func.func @transform_6(%arg0: i32) -> (i32, i32) {
    %c0_i32 = arith.constant 0 : i32
    %c0_i32_0 = arith.constant 0 : i32
    %c0_i32_1 = arith.constant 0 : i32
    return %c0_i32, %c0_i32_0 : i32, i32
  }
  func.func @transform_7(%arg0: i32) -> (i32, i32) {
    %c0_i32 = arith.constant 0 : i32
    %c0_i32_0 = arith.constant 0 : i32
    %c0_i32_1 = arith.constant 0 : i32
    return %c0_i32, %c0_i32_0 : i32, i32
  }
  func.func @transform_8(%arg0: i32) -> (i32, i32) {
    %c0_i32 = arith.constant 0 : i32
    %c0_i32_0 = arith.constant 0 : i32
    %c0_i32_1 = arith.constant 0 : i32
    return %c0_i32, %c0_i32_0 : i32, i32
  }
  func.func @transform_9(%arg0: i32) -> (i32, i32) {
    %c0_i32 = arith.constant 0 : i32
    %c0_i32_0 = arith.constant 0 : i32
    %c0_i32_1 = arith.constant 0 : i32
    return %c0_i32, %c0_i32_0 : i32, i32
  }
  func.func @transform_10(%arg0: i32) -> (i32, i32) {
    %c0_i32 = arith.constant 0 : i32
    %c0_i32_0 = arith.constant 0 : i32
    %c0_i32_1 = arith.constant 0 : i32
    return %c0_i32, %c0_i32_0 : i32, i32
  }
  func.func @transform_11(%arg0: i32) -> (i32, i32) {
    %c0_i32 = arith.constant 0 : i32
    %c0_i32_0 = arith.constant 0 : i32
    return %arg0, %c0_i32 : i32, i32
  }
}

</mosaic_0001>

<llo_original>
// kernel: tpu_custom_call.1
$region0: #{tpu_custom_call.1}
  #allocation0 [shape = 'u32[]', space=smem, size = 0x4, offset = 0x4, fixed_abs, tag = 'smem constant byte address 0x4 - core index']
  #allocation1 [shape = 'u32[72,128]{1,0:T(1,128)}', space=vmem, size = 0x9000, scoped, tag = 'internal scratch']
  %s0 = inlined_call_operand.hbm [shape: f32[8,32], index: 0, kind: input, shape index: {}]
  %s1 = inlined_call_operand.hbm [shape: bf16[32,512], index: 1, kind: input, shape index: {}]
  %s2 = inlined_call_operand.hbm [shape: f32[1,512], index: 2, kind: input, shape index: {}]
  %s3 = inlined_call_operand.hbm [shape: bf16[512,256], index: 3, kind: input, shape index: {}]
  %s4 = inlined_call_operand.vmem [shape: f32[1,256], index: 4, kind: input, shape index: {}]
  %s5 = inlined_call_operand.hbm [shape: bf16[256,128], index: 5, kind: input, shape index: {}]
  %s6 = inlined_call_operand.vmem [shape: f32[1,128], index: 6, kind: input, shape index: {}]
  %s7 = inlined_call_operand.hbm [shape: bf16[128,128], index: 7, kind: input, shape index: {}]
  %s8 = inlined_call_operand.vmem [shape: f32[1,128], index: 8, kind: input, shape index: {}]
  %s9 = inlined_call_operand.hbm [shape: bf16[128,128], index: 9, kind: input, shape index: {}]
  %s10 = inlined_call_operand.vmem [shape: f32[1,128], index: 10, kind: input, shape index: {}]
  %s11 = inlined_call_operand.hbm [shape: bf16[8,128], index: 11, kind: output, shape index: {}]
  %s12 = sld [smem:[#allocation0]]
  $region82: #{tpu_custom_call.1} parent=0
    _
  %s14 = ssub.s32 1, %s12
  %s15 = scalar_select 0, %s14, %s12
  $region1: #{tpu_custom_call.1} parent=0
    #allocation2 [shape = 'u8[4096]{0}', space=vmem, size = 0x1000, scoped, tag = 'input window, operand 0, single buffered']
    #allocation3 [shape = 's32[1]{0}', space=sflag, size = 0x4, scoped, tag = 'scoped memory for tpu_custom_call.1']
    #allocation4 [shape = 's32[1]{0}', space=sflag, size = 0x4, scoped, tag = 'scoped memory for tpu_custom_call.1']
    #allocation5 [shape = 'u8[32768]{0}', space=vmem, size = 0x8000, scoped, tag = 'input window, operand 1, single buffered']
    #allocation6 [shape = 's32[1]{0}', space=sflag, size = 0x4, scoped, tag = 'scoped memory for tpu_custom_call.1']
    #allocation7 [shape = 'u8[2048]{0}', space=vmem, size = 0x800, scoped, tag = 'input window, operand 2, single buffered']
    #allocation8 [shape = 'u8[262144]{0}', space=vmem, size = 0x40000, scoped, tag = 'input window, operand 3, single buffered']
    #allocation9 [shape = 's32[1]{0}', space=sflag, size = 0x4, scoped, tag = 'scoped memory for tpu_custom_call.1']
    #allocation10 [shape = 'u8[65536]{0}', space=vmem, size = 0x10000, scoped, tag = 'input window, operand 5, single buffered']
    #allocation11 [shape = 'u8[32768]{0}', space=vmem, size = 0x8000, scoped, tag = 'input window, operand 7, single buffered']
    #allocation12 [shape = 's32[1]{0}', space=sflag, size = 0x4, scoped, tag = 'scoped memory for tpu_custom_call.1']
    #allocation13 [shape = 'u8[32768]{0}', space=vmem, size = 0x8000, scoped, tag = 'input window, operand 9, single buffered']
    #allocation14 [shape = 'u8[2048]{0}', space=vmem, size = 0x800, scoped, tag = 'output window, operand 0, single buffered']
    %16 = vsyncpa [#allocation3], 0
    %17 = vsyncpa [#allocation6], 0
    %18 = vsyncpa [#allocation9], 0
    %19 = vsyncpa [#allocation12], 0
    %20 = vsyncpa [#allocation4], 0
    // Predicated region
    $region2: #{tpu_custom_call.1} parent=1 // pred_check
      _
    $region3: #{tpu_custom_call.1} parent=1 // pred_check_branch
      %22 = sbr.rel (0) target = $region5
    $region4: #{tpu_custom_call.1} parent=1 // pred_region
      %24 = vsyncadd [#allocation3], 0
      %s26 = sshll.u32 %s0, 4
      %s27 = int_to_ptr.hbm [resolvable:$true] %s26
      %s28 = sshll.u32 [#allocation2], 4
      %s29 = int_to_ptr.vmem [resolvable:$true] %s28
      %31 = dma.hbm_to_vmem [thread:$0]  %s27, 128, %s29, [#allocation3]
    $region5: #{tpu_custom_call.1} parent=1 // pred_fallthru
      _
    // Predicated region
    $region6: #{tpu_custom_call.1} parent=1 // pred_check
      _
    $region7: #{tpu_custom_call.1} parent=1 // pred_check_branch
      %33 = sbr.rel (0) target = $region9
    $region8: #{tpu_custom_call.1} parent=1 // pred_region
      %35 = vsyncadd [#allocation6], 0
      %s36 = sshll.u32 %s1, 4
      %s37 = int_to_ptr.hbm [resolvable:$true] %s36
      %s38 = sshll.u32 [#allocation5], 4
      %s39 = int_to_ptr.vmem [resolvable:$true] %s38
      %44 = dma.hbm_to_vmem [thread:$0]  %s37, 1024, %s39, [#allocation6], 256, 256, 16
    $region9: #{tpu_custom_call.1} parent=1 // pred_fallthru
      _
    // Predicated region
    $region10: #{tpu_custom_call.1} parent=1 // pred_check
      _
    $region11: #{tpu_custom_call.1} parent=1 // pred_check_branch
      %46 = sbr.rel (0) target = $region13
    $region12: #{tpu_custom_call.1} parent=1 // pred_region
      %48 = vsyncadd [#allocation6], 0
      %s50 = sshll.u32 %s2, 4
      %s51 = int_to_ptr.hbm [resolvable:$true] %s50
      %s52 = sshll.u32 [#allocation7], 4
      %s53 = int_to_ptr.vmem [resolvable:$true] %s52
      %55 = dma.hbm_to_vmem [thread:$0]  %s51, 64, %s53, [#allocation6]
    $region13: #{tpu_custom_call.1} parent=1 // pred_fallthru
      _
    // Predicated region
    $region14: #{tpu_custom_call.1} parent=1 // pred_check
      _
    $region15: #{tpu_custom_call.1} parent=1 // pred_check_branch
      %57 = sbr.rel (0) target = $region17
    $region16: #{tpu_custom_call.1} parent=1 // pred_region
      %59 = vsyncadd [#allocation9], 0
      %s60 = sshll.u32 %s3, 4
      %s61 = int_to_ptr.hbm [resolvable:$true] %s60
      %s62 = sshll.u32 [#allocation8], 4
      %s63 = int_to_ptr.vmem [resolvable:$true] %s62
      %68 = dma.hbm_to_vmem [thread:$0]  %s61, 8192, %s63, [#allocation9], 128, 128, 8
    $region17: #{tpu_custom_call.1} parent=1 // pred_fallthru
      _
    // Predicated region
    $region18: #{tpu_custom_call.1} parent=1 // pred_check
      _
    $region19: #{tpu_custom_call.1} parent=1 // pred_check_branch
      %70 = sbr.rel (0) target = $region21
    $region20: #{tpu_custom_call.1} parent=1 // pred_region
      _
    $region21: #{tpu_custom_call.1} parent=1 // pred_fallthru
      _
    // Predicated region
    $region22: #{tpu_custom_call.1} parent=1 // pred_check
      _
    $region23: #{tpu_custom_call.1} parent=1 // pred_check_branch
      %72 = sbr.rel (0) target = $region25
    $region24: #{tpu_custom_call.1} parent=1 // pred_region
      %74 = vsyncadd [#allocation9], 0
      %s75 = sshll.u32 %s5, 4
      %s76 = int_to_ptr.hbm [resolvable:$true] %s75
      %s77 = sshll.u32 [#allocation10], 4
      %s78 = int_to_ptr.vmem [resolvable:$true] %s77
      %83 = dma.hbm_to_vmem [thread:$0]  %s76, 2048, %s78, [#allocation9], 64, 64, 4
    $region25: #{tpu_custom_call.1} parent=1 // pred_fallthru
      _
    // Predicated region
    $region26: #{tpu_custom_call.1} parent=1 // pred_check
      _
    $region27: #{tpu_custom_call.1} parent=1 // pred_check_branch
      %85 = sbr.rel (0) target = $region29
    $region28: #{tpu_custom_call.1} parent=1 // pred_region
      _
    $region29: #{tpu_custom_call.1} parent=1 // pred_fallthru
      _
    // Predicated region
    $region30: #{tpu_custom_call.1} parent=1 // pred_check
      _
    $region31: #{tpu_custom_call.1} parent=1 // pred_check_branch
      %87 = sbr.rel (0) target = $region33
    $region32: #{tpu_custom_call.1} parent=1 // pred_region
      %89 = vsyncadd [#allocation12], 0
      %s90 = sshll.u32 %s7, 4
      %s91 = int_to_ptr.hbm [resolvable:$true] %s90
      %s92 = sshll.u32 [#allocation11], 4
      %s93 = int_to_ptr.vmem [resolvable:$true] %s92
      %98 = dma.hbm_to_vmem [thread:$0]  %s91, 1024, %s93, [#allocation12], 64, 64, 4
    $region33: #{tpu_custom_call.1} parent=1 // pred_fallthru
      _
    // Predicated region
    $region34: #{tpu_custom_call.1} parent=1 // pred_check
      _
    $region35: #{tpu_custom_call.1} parent=1 // pred_check_branch
      %100 = sbr.rel (0) target = $region37
    $region36: #{tpu_custom_call.1} parent=1 // pred_region
      _
    $region37: #{tpu_custom_call.1} parent=1 // pred_fallthru
      _
    // Predicated region
    $region38: #{tpu_custom_call.1} parent=1 // pred_check
      _
    $region39: #{tpu_custom_call.1} parent=1 // pred_check_branch
      %102 = sbr.rel (0) target = $region41
    $region40: #{tpu_custom_call.1} parent=1 // pred_region
      %104 = vsyncadd [#allocation12], 0
      %s105 = sshll.u32 %s9, 4
      %s106 = int_to_ptr.hbm [resolvable:$true] %s105
      %s107 = sshll.u32 [#allocation13], 4
      %s108 = int_to_ptr.vmem [resolvable:$true] %s107
      %113 = dma.hbm_to_vmem [thread:$0]  %s106, 1024, %s108, [#allocation12], 64, 64, 4
    $region41: #{tpu_custom_call.1} parent=1 // pred_fallthru
      _
    // Predicated region
    $region42: #{tpu_custom_call.1} parent=1 // pred_check
      _
    $region43: #{tpu_custom_call.1} parent=1 // pred_check_branch
      %115 = sbr.rel (0) target = $region45
    $region44: #{tpu_custom_call.1} parent=1 // pred_region
      _
    $region45: #{tpu_custom_call.1} parent=1 // pred_fallthru
      _
    // Predicated region
    $region46: #{tpu_custom_call.1} parent=1 // pred_check
      _
    $region47: #{tpu_custom_call.1} parent=1 // pred_check_branch
      %117 = sbr.rel (0) target = $region49
    $region48: #{tpu_custom_call.1} parent=1 // pred_region
      %119 = dma.done [#allocation3], 128
    $region49: #{tpu_custom_call.1} parent=1 // pred_fallthru
      _
    // Predicated region
    $region50: #{tpu_custom_call.1} parent=1 // pred_check
      _
    $region51: #{tpu_custom_call.1} parent=1 // pred_check_branch
      %121 = sbr.rel (0) target = $region53
    $region52: #{tpu_custom_call.1} parent=1 // pred_region
      %123 = dma.done [#allocation6], 1024
    $region53: #{tpu_custom_call.1} parent=1 // pred_fallthru
      _
    // Predicated region
    $region54: #{tpu_custom_call.1} parent=1 // pred_check
      _
    $region55: #{tpu_custom_call.1} parent=1 // pred_check_branch
      %125 = sbr.rel (0) target = $region57
    $region56: #{tpu_custom_call.1} parent=1 // pred_region
      %127 = dma.done [#allocation6], 64
    $region57: #{tpu_custom_call.1} parent=1 // pred_fallthru
      _
    // Predicated region
    $region58: #{tpu_custom_call.1} parent=1 // pred_check
      _
    $region59: #{tpu_custom_call.1} parent=1 // pred_check_branch
      %129 = sbr.rel (0) target = $region61
    $region60: #{tpu_custom_call.1} parent=1 // pred_region
      %131 = dma.done [#allocation9], 8192
    $region61: #{tpu_custom_call.1} parent=1 // pred_fallthru
      _
    // Predicated region
    $region62: #{tpu_custom_call.1} parent=1 // pred_check
      _
    $region63: #{tpu_custom_call.1} parent=1 // pred_check_branch
      %133 = sbr.rel (0) target = $region65
    $region64: #{tpu_custom_call.1} parent=1 // pred_region
      %135 = dma.done [#allocation9], 2048
    $region65: #{tpu_custom_call.1} parent=1 // pred_fallthru
      _
    // Predicated region
    $region66: #{tpu_custom_call.1} parent=1 // pred_check
      _
    $region67: #{tpu_custom_call.1} parent=1 // pred_check_branch
      %137 = sbr.rel (0) target = $region69
    $region68: #{tpu_custom_call.1} parent=1 // pred_region
      %139 = dma.done [#allocation12], 1024
    $region69: #{tpu_custom_call.1} parent=1 // pred_fallthru
      _
    // Predicated region
    $region70: #{tpu_custom_call.1} parent=1 // pred_check
      _
    $region71: #{tpu_custom_call.1} parent=1 // pred_check_branch
      %141 = sbr.rel (0) target = $region73
    $region72: #{tpu_custom_call.1} parent=1 // pred_region
      %143 = dma.done [#allocation12], 1024
    $region73: #{tpu_custom_call.1} parent=1 // pred_fallthru
      _
    %v145 = vld [vmem:[#allocation2] sm:$0xff]
    %v146 = vpack.c.bf16 %v145, %v145
    %v147 = vld [vmem:[#allocation5] sm:$0xff]
    %v148 = vld [vmem:[#allocation5 + $0x8] sm:$0xff]
    %v149 = vld [vmem:[#allocation5 + $0x10] sm:$0xff]
    %v150 = vld [vmem:[#allocation5 + $0x18] sm:$0xff]
    %v151 = vld [vmem:[#allocation5 + $0x20] sm:$0xff]
    %v152 = vld [vmem:[#allocation5 + $0x28] sm:$0xff]
    %v153 = vld [vmem:[#allocation5 + $0x30] sm:$0xff]
    %v154 = vld [vmem:[#allocation5 + $0x38] sm:$0xff]
    %v155 = vld [vmem:[#allocation7] sm:$0xf]
    %v157 = vperm.slane %v155, 0
    %v158 = vperm.slane %v155, 1
    %v159 = vperm.slane %v155, 2
    %v160 = vperm.slane %v155, 3
    %v173 = vunpack.c.l.b16 %v147
    %v174 = vunpack.c.h.b16 %v147
    %v175 = vunpack.c.l.b16 %v148
    %v176 = vunpack.c.h.b16 %v148
    %v177 = vunpack.c.l.b16 %v149
    %v178 = vunpack.c.h.b16 %v149
    %v179 = vunpack.c.l.b16 %v150
    %v180 = vunpack.c.h.b16 %v150
    %v181 = vunpack.c.l.b16 %v151
    %v182 = vunpack.c.h.b16 %v151
    %v183 = vunpack.c.l.b16 %v152
    %v184 = vunpack.c.h.b16 %v152
    %v185 = vunpack.c.l.b16 %v153
    %v186 = vunpack.c.h.b16 %v153
    %v187 = vunpack.c.l.b16 %v154
    %v188 = vunpack.c.h.b16 %v154
    %v189 = vpack.c.b16 %v177, %v173
    %v190 = vpack.c.b16 %v178, %v174
    %v191 = vpack.c.b16 %v179, %v175
    %v192 = vpack.c.b16 %v180, %v176
    %v193 = vpack.c.b16 %v185, %v181
    %v194 = vpack.c.b16 %v186, %v182
    %v195 = vpack.c.b16 %v187, %v183
    %v196 = vpack.c.b16 %v188, %v184
    %vm205 = vcmask 261120
    %v207 = vsel %vm205, %v146, 0
    %209 = vmatpush.bf16.msra.mxu0 0
    %210 = vmatpush.bf16.msra.mxu0 0
    %211 = vmatpush.bf16.msra.mxu0 0
    %212 = vmatpush.bf16.msra.mxu0 0
    %213 = vmatpush.bf16.msra.mxu0 0
    %214 = vmatpush.bf16.msra.mxu0 0
    %215 = vmatpush.bf16.msra.mxu0 %v193
    %216 = vmatpush.bf16.msra.mxu0 %v189
    %217 = vmatmul.bf16.gmra.mxu0 %v207
    %v218 = vpop.f32.mrf.mxu0
    %v219 = vadd.f32 %v157, %v218
    %v220 = vpop.f32.mrf.mxu0
    %221 = vdwg.mxu0
    %222 = vmatpush.bf16.msra.mxu0 0
    %223 = vmatpush.bf16.msra.mxu0 0
    %224 = vmatpush.bf16.msra.mxu0 0
    %225 = vmatpush.bf16.msra.mxu0 0
    %226 = vmatpush.bf16.msra.mxu0 0
    %227 = vmatpush.bf16.msra.mxu0 0
    %228 = vmatpush.bf16.msra.mxu0 %v194
    %229 = vmatpush.bf16.msra.mxu0 %v190
    %230 = vmatmul.bf16.gmra.mxu0 %v207
    %v231 = vpop.f32.mrf.mxu0
    %v232 = vadd.f32 %v158, %v231
    %v233 = vpop.f32.mrf.mxu0
    %234 = vdwg.mxu0
    %235 = vmatpush.bf16.msra.mxu0 0
    %236 = vmatpush.bf16.msra.mxu0 0
    %237 = vmatpush.bf16.msra.mxu0 0
    %238 = vmatpush.bf16.msra.mxu0 0
    %239 = vmatpush.bf16.msra.mxu0 0
    %240 = vmatpush.bf16.msra.mxu0 0
    %241 = vmatpush.bf16.msra.mxu0 %v195
    %242 = vmatpush.bf16.msra.mxu0 %v191
    %243 = vmatmul.bf16.gmra.mxu0 %v207
    %v244 = vpop.f32.mrf.mxu0
    %v245 = vadd.f32 %v159, %v244
    %v246 = vpop.f32.mrf.mxu0
    %247 = vdwg.mxu0
    %248 = vmatpush.bf16.msra.mxu0 0
    %249 = vmatpush.bf16.msra.mxu0 0
    %250 = vmatpush.bf16.msra.mxu0 0
    %251 = vmatpush.bf16.msra.mxu0 0
    %252 = vmatpush.bf16.msra.mxu0 0
    %253 = vmatpush.bf16.msra.mxu0 0
    %254 = vmatpush.bf16.msra.mxu0 %v196
    %255 = vmatpush.bf16.msra.mxu0 %v192
    %256 = vmatmul.bf16.gmra.mxu0 %v207
    %v257 = vpop.f32.mrf.mxu0
    %v258 = vadd.f32 %v160, %v257
    %v259 = vpop.f32.mrf.mxu0
    %260 = vdwg.mxu0
    %v261 = vmax.f32 %v219, 0.0
    %v262 = vmax.f32 %v232, 0.0
    %v263 = vmax.f32 %v245, 0.0
    %v264 = vmax.f32 %v258, 0.0
    %v265 = vpack.c.bf16 %v261, %v261
    %v266 = vpack.c.bf16 %v262, %v262
    %v267 = vpack.c.bf16 %v263, %v263
    %v268 = vpack.c.bf16 %v264, %v264
    %v269 = vld [vmem:[#allocation8] sm:$0xff]
    %v270 = vld [vmem:[#allocation8 + $0x8] sm:$0xff]
    %v271 = vld [vmem:[#allocation8 + $0x10] sm:$0xff]
    %v272 = vld [vmem:[#allocation8 + $0x18] sm:$0xff]
    %v273 = vld [vmem:[#allocation8 + $0x20] sm:$0xff]
    %v274 = vld [vmem:[#allocation8 + $0x28] sm:$0xff]
    %v275 = vld [vmem:[#allocation8 + $0x30] sm:$0xff]
    %v276 = vld [vmem:[#allocation8 + $0x38] sm:$0xff]
    %v277 = vld [vmem:[#allocation8 + $0x40] sm:$0xff]
    %v278 = vld [vmem:[#allocation8 + $0x48] sm:$0xff]
    %v279 = vld [vmem:[#allocation8 + $0x50] sm:$0xff]
    %v280 = vld [vmem:[#allocation8 + $0x58] sm:$0xff]
    %v281 = vld [vmem:[#allocation8 + $0x60] sm:$0xff]
    %v282 = vld [vmem:[#allocation8 + $0x68] sm:$0xff]
    %v283 = vld [vmem:[#allocation8 + $0x70] sm:$0xff]
    %v284 = vld [vmem:[#allocation8 + $0x78] sm:$0xff]
    %v285 = vld [vmem:[#allocation8 + $0x80] sm:$0xff]
    %v286 = vld [vmem:[#allocation8 + $0x88] sm:$0xff]
    %v287 = vld [vmem:[#allocation8 + $0x90] sm:$0xff]
    %v288 = vld [vmem:[#allocation8 + $0x98] sm:$0xff]
    %v289 = vld [vmem:[#allocation8 + $0xa0] sm:$0xff]
    %v290 = vld [vmem:[#allocation8 + $0xa8] sm:$0xff]
    %v291 = vld [vmem:[#allocation8 + $0xb0] sm:$0xff]
    %v292 = vld [vmem:[#allocation8 + $0xb8] sm:$0xff]
    %v293 = vld [vmem:[#allocation8 + $0xc0] sm:$0xff]
    %v294 = vld [vmem:[#allocation8 + $0xc8] sm:$0xff]
    %v295 = vld [vmem:[#allocation8 + $0xd0] sm:$0xff]
    %v296 = vld [vmem:[#allocation8 + $0xd8] sm:$0xff]
    %v297 = vld [vmem:[#allocation8 + $0xe0] sm:$0xff]
    %v298 = vld [vmem:[#allocation8 + $0xe8] sm:$0xff]
    %v299 = vld [vmem:[#allocation8 + $0xf0] sm:$0xff]
    %v300 = vld [vmem:[#allocation8 + $0xf8] sm:$0xff]
    %v301 = vld [vmem:[#allocation8 + $0x100] sm:$0xff]
    %v302 = vld [vmem:[#allocation8 + $0x108] sm:$0xff]
    %v303 = vld [vmem:[#allocation8 + $0x110] sm:$0xff]
    %v304 = vld [vmem:[#allocation8 + $0x118] sm:$0xff]
    %v305 = vld [vmem:[#allocation8 + $0x120] sm:$0xff]
    %v306 = vld [vmem:[#allocation8 + $0x128] sm:$0xff]
    %v307 = vld [vmem:[#allocation8 + $0x130] sm:$0xff]
    %v308 = vld [vmem:[#allocation8 + $0x138] sm:$0xff]
    %v309 = vld [vmem:[#allocation8 + $0x140] sm:$0xff]
    %v310 = vld [vmem:[#allocation8 + $0x148] sm:$0xff]
    %v311 = vld [vmem:[#allocation8 + $0x150] sm:$0xff]
    %v312 = vld [vmem:[#allocation8 + $0x158] sm:$0xff]
    %v313 = vld [vmem:[#allocation8 + $0x160] sm:$0xff]
    %v314 = vld [vmem:[#allocation8 + $0x168] sm:$0xff]
    %v315 = vld [vmem:[#allocation8 + $0x170] sm:$0xff]
    %v316 = vld [vmem:[#allocation8 + $0x178] sm:$0xff]
    %v317 = vld [vmem:[#allocation8 + $0x180] sm:$0xff]
    %v318 = vld [vmem:[#allocation8 + $0x188] sm:$0xff]
    %v319 = vld [vmem:[#allocation8 + $0x190] sm:$0xff]
    %v320 = vld [vmem:[#allocation8 + $0x198] sm:$0xff]
    %v321 = vld [vmem:[#allocation8 + $0x1a0] sm:$0xff]
    %v322 = vld [vmem:[#allocation8 + $0x1a8] sm:$0xff]
    %v323 = vld [vmem:[#allocation8 + $0x1b0] sm:$0xff]
    %v324 = vld [vmem:[#allocation8 + $0x1b8] sm:$0xff]
    %v325 = vld [vmem:[#allocation8 + $0x1c0] sm:$0xff]
    %v326 = vld [vmem:[#allocation8 + $0x1c8] sm:$0xff]
    %v327 = vld [vmem:[#allocation8 + $0x1d0] sm:$0xff]
    %v328 = vld [vmem:[#allocation8 + $0x1d8] sm:$0xff]
    %v329 = vld [vmem:[#allocation8 + $0x1e0] sm:$0xff]
    %v330 = vld [vmem:[#allocation8 + $0x1e8] sm:$0xff]
    %v331 = vld [vmem:[#allocation8 + $0x1f0] sm:$0xff]
    %v332 = vld [vmem:[#allocation8 + $0x1f8] sm:$0xff]
    %v333 = vld [vmem:[%s4] sm:$0x3]
    %v335 = vperm.slane %v333, 0
    %v336 = vperm.slane %v333, 1
    %v403 = vunpack.c.l.b16 %v269
    %v404 = vunpack.c.h.b16 %v269
    %v405 = vunpack.c.l.b16 %v270
    %v406 = vunpack.c.h.b16 %v270
    %v407 = vunpack.c.l.b16 %v271
    %v408 = vunpack.c.h.b16 %v271
    %v409 = vunpack.c.l.b16 %v272
    %v410 = vunpack.c.h.b16 %v272
    %v411 = vunpack.c.l.b16 %v273
    %v412 = vunpack.c.h.b16 %v273
    %v413 = vunpack.c.l.b16 %v274
    %v414 = vunpack.c.h.b16 %v274
    %v415 = vunpack.c.l.b16 %v275
    %v416 = vunpack.c.h.b16 %v275
    %v417 = vunpack.c.l.b16 %v276
    %v418 = vunpack.c.h.b16 %v276
    %v419 = vunpack.c.l.b16 %v277
    %v420 = vunpack.c.h.b16 %v277
    %v421 = vunpack.c.l.b16 %v278
    %v422 = vunpack.c.h.b16 %v278
    %v423 = vunpack.c.l.b16 %v279
    %v424 = vunpack.c.h.b16 %v279
    %v425 = vunpack.c.l.b16 %v280
    %v426 = vunpack.c.h.b16 %v280
    %v427 = vunpack.c.l.b16 %v281
    %v428 = vunpack.c.h.b16 %v281
    %v429 = vunpack.c.l.b16 %v282
    %v430 = vunpack.c.h.b16 %v282
    %v431 = vunpack.c.l.b16 %v283
    %v432 = vunpack.c.h.b16 %v283
    %v433 = vunpack.c.l.b16 %v284
    %v434 = vunpack.c.h.b16 %v284
    %v435 = vunpack.c.l.b16 %v285
    %v436 = vunpack.c.h.b16 %v285
    %v437 = vunpack.c.l.b16 %v286
    %v438 = vunpack.c.h.b16 %v286
    %v439 = vunpack.c.l.b16 %v287
    %v440 = vunpack.c.h.b16 %v287
    %v441 = vunpack.c.l.b16 %v288
    %v442 = vunpack.c.h.b16 %v288
    %v443 = vunpack.c.l.b16 %v289
    %v444 = vunpack.c.h.b16 %v289
    %v445 = vunpack.c.l.b16 %v290
    %v446 = vunpack.c.h.b16 %v290
    %v447 = vunpack.c.l.b16 %v291
    %v448 = vunpack.c.h.b16 %v291
    %v449 = vunpack.c.l.b16 %v292
    %v450 = vunpack.c.h.b16 %v292
    %v451 = vunpack.c.l.b16 %v293
    %v452 = vunpack.c.h.b16 %v293
    %v453 = vunpack.c.l.b16 %v294
    %v454 = vunpack.c.h.b16 %v294
    %v455 = vunpack.c.l.b16 %v295
    %v456 = vunpack.c.h.b16 %v295
    %v457 = vunpack.c.l.b16 %v296
    %v458 = vunpack.c.h.b16 %v296
    %v459 = vunpack.c.l.b16 %v297
    %v460 = vunpack.c.h.b16 %v297
    %v461 = vunpack.c.l.b16 %v298
    %v462 = vunpack.c.h.b16 %v298
    %v463 = vunpack.c.l.b16 %v299
    %v464 = vunpack.c.h.b16 %v299
    %v465 = vunpack.c.l.b16 %v300
    %v466 = vunpack.c.h.b16 %v300
    %v467 = vunpack.c.l.b16 %v301
    %v468 = vunpack.c.h.b16 %v301
    %v469 = vunpack.c.l.b16 %v302
    %v470 = vunpack.c.h.b16 %v302
    %v471 = vunpack.c.l.b16 %v303
    %v472 = vunpack.c.h.b16 %v303
    %v473 = vunpack.c.l.b16 %v304
    %v474 = vunpack.c.h.b16 %v304
    %v475 = vunpack.c.l.b16 %v305
    %v476 = vunpack.c.h.b16 %v305
    %v477 = vunpack.c.l.b16 %v306
    %v478 = vunpack.c.h.b16 %v306
    %v479 = vunpack.c.l.b16 %v307
    %v480 = vunpack.c.h.b16 %v307
    %v481 = vunpack.c.l.b16 %v308
    %v482 = vunpack.c.h.b16 %v308
    %v483 = vunpack.c.l.b16 %v309
    %v484 = vunpack.c.h.b16 %v309
    %v485 = vunpack.c.l.b16 %v310
    %v486 = vunpack.c.h.b16 %v310
    %v487 = vunpack.c.l.b16 %v311
    %v488 = vunpack.c.h.b16 %v311
    %v489 = vunpack.c.l.b16 %v312
    %v490 = vunpack.c.h.b16 %v312
    %v491 = vunpack.c.l.b16 %v313
    %v492 = vunpack.c.h.b16 %v313
    %v493 = vunpack.c.l.b16 %v314
    %v494 = vunpack.c.h.b16 %v314
    %v495 = vunpack.c.l.b16 %v315
    %v496 = vunpack.c.h.b16 %v315
    %v497 = vunpack.c.l.b16 %v316
    %v498 = vunpack.c.h.b16 %v316
    %v499 = vunpack.c.l.b16 %v317
    %v500 = vunpack.c.h.b16 %v317
    %v501 = vunpack.c.l.b16 %v318
    %v502 = vunpack.c.h.b16 %v318
    %v503 = vunpack.c.l.b16 %v319
    %v504 = vunpack.c.h.b16 %v319
    %v505 = vunpack.c.l.b16 %v320
    %v506 = vunpack.c.h.b16 %v320
    %v507 = vunpack.c.l.b16 %v321
    %v508 = vunpack.c.h.b16 %v321
    %v509 = vunpack.c.l.b16 %v322
    %v510 = vunpack.c.h.b16 %v322
    %v511 = vunpack.c.l.b16 %v323
    %v512 = vunpack.c.h.b16 %v323
    %v513 = vunpack.c.l.b16 %v324
    %v514 = vunpack.c.h.b16 %v324
    %v515 = vunpack.c.l.b16 %v325
    %v516 = vunpack.c.h.b16 %v325
    %v517 = vunpack.c.l.b16 %v326
    %v518 = vunpack.c.h.b16 %v326
    %v519 = vunpack.c.l.b16 %v327
    %v520 = vunpack.c.h.b16 %v327
    %v521 = vunpack.c.l.b16 %v328
    %v522 = vunpack.c.h.b16 %v328
    %v523 = vunpack.c.l.b16 %v329
    %v524 = vunpack.c.h.b16 %v329
    %v525 = vunpack.c.l.b16 %v330
    %v526 = vunpack.c.h.b16 %v330
    %v527 = vunpack.c.l.b16 %v331
    %v528 = vunpack.c.h.b16 %v331
    %v529 = vunpack.c.l.b16 %v332
    %v530 = vunpack.c.h.b16 %v332
    %v531 = vpack.c.b16 %v405, %v403
    %v532 = vpack.c.b16 %v406, %v404
    %v533 = vpack.c.b16 %v409, %v407
    %v534 = vpack.c.b16 %v410, %v408
    %v535 = vpack.c.b16 %v413, %v411
    %v536 = vpack.c.b16 %v414, %v412
    %v537 = vpack.c.b16 %v417, %v415
    %v538 = vpack.c.b16 %v418, %v416
    %v539 = vpack.c.b16 %v421, %v419
    %v540 = vpack.c.b16 %v422, %v420
    %v541 = vpack.c.b16 %v425, %v423
    %v542 = vpack.c.b16 %v426, %v424
    %v543 = vpack.c.b16 %v429, %v427
    %v544 = vpack.c.b16 %v430, %v428
    %v545 = vpack.c.b16 %v433, %v431
    %v546 = vpack.c.b16 %v434, %v432
    %v547 = vpack.c.b16 %v437, %v435
    %v548 = vpack.c.b16 %v438, %v436
    %v549 = vpack.c.b16 %v441, %v439
    %v550 = vpack.c.b16 %v442, %v440
    %v551 = vpack.c.b16 %v445, %v443
    %v552 = vpack.c.b16 %v446, %v444
    %v553 = vpack.c.b16 %v449, %v447
    %v554 = vpack.c.b16 %v450, %v448
    %v555 = vpack.c.b16 %v453, %v451
    %v556 = vpack.c.b16 %v454, %v452
    %v557 = vpack.c.b16 %v457, %v455
    %v558 = vpack.c.b16 %v458, %v456
    %v559 = vpack.c.b16 %v461, %v459
    %v560 = vpack.c.b16 %v462, %v460
    %v561 = vpack.c.b16 %v465, %v463
    %v562 = vpack.c.b16 %v466, %v464
    %v563 = vpack.c.b16 %v469, %v467
    %v564 = vpack.c.b16 %v470, %v468
    %v565 = vpack.c.b16 %v473, %v471
    %v566 = vpack.c.b16 %v474, %v472
    %v567 = vpack.c.b16 %v477, %v475
    %v568 = vpack.c.b16 %v478, %v476
    %v569 = vpack.c.b16 %v481, %v479
    %v570 = vpack.c.b16 %v482, %v480
    %v571 = vpack.c.b16 %v485, %v483
    %v572 = vpack.c.b16 %v486, %v484
    %v573 = vpack.c.b16 %v489, %v487
    %v574 = vpack.c.b16 %v490, %v488
    %v575 = vpack.c.b16 %v493, %v491
    %v576 = vpack.c.b16 %v494, %v492
    %v577 = vpack.c.b16 %v497, %v495
    %v578 = vpack.c.b16 %v498, %v496
    %v579 = vpack.c.b16 %v501, %v499
    %v580 = vpack.c.b16 %v502, %v500
    %v581 = vpack.c.b16 %v505, %v503
    %v582 = vpack.c.b16 %v506, %v504
    %v583 = vpack.c.b16 %v509, %v507
    %v584 = vpack.c.b16 %v510, %v508
    %v585 = vpack.c.b16 %v513, %v511
    %v586 = vpack.c.b16 %v514, %v512
    %v587 = vpack.c.b16 %v517, %v515
    %v588 = vpack.c.b16 %v518, %v516
    %v589 = vpack.c.b16 %v521, %v519
    %v590 = vpack.c.b16 %v522, %v520
    %v591 = vpack.c.b16 %v525, %v523
    %v592 = vpack.c.b16 %v526, %v524
    %v593 = vpack.c.b16 %v529, %v527
    %v594 = vpack.c.b16 %v530, %v528
    %659 = vmatpush.bf16.msra.mxu0 %v545
    %660 = vmatpush.bf16.msra.mxu0 %v543
    %661 = vmatpush.bf16.msra.mxu0 %v541
    %662 = vmatpush.bf16.msra.mxu0 %v539
    %663 = vmatpush.bf16.msra.mxu0 %v537
    %664 = vmatpush.bf16.msra.mxu0 %v535
    %665 = vmatpush.bf16.msra.mxu0 %v533
    %666 = vmatpush.bf16.msra.mxu0 %v531
    %667 = vmatmul.bf16.gmra.mxu0 %v265
    %v668 = vpop.f32.mrf.mxu0
    %v669 = vadd.f32 %v335, %v668
    %v670 = vpop.f32.mrf.mxu0
    %671 = vdwg.mxu0
    %672 = vmatpush.bf16.msra.mxu0 %v561
    %673 = vmatpush.bf16.msra.mxu0 %v559
    %674 = vmatpush.bf16.msra.mxu0 %v557
    %675 = vmatpush.bf16.msra.mxu0 %v555
    %676 = vmatpush.bf16.msra.mxu0 %v553
    %677 = vmatpush.bf16.msra.mxu0 %v551
    %678 = vmatpush.bf16.msra.mxu0 %v549
    %679 = vmatpush.bf16.msra.mxu0 %v547
    %680 = vmatmul.bf16.gmra.mxu0 %v266
    %v681 = vpop.f32.mrf.mxu0
    %v682 = vadd.f32 %v669, %v681
    %v683 = vpop.f32.mrf.mxu0
    %684 = vdwg.mxu0
    %685 = vmatpush.bf16.msra.mxu0 %v577
    %686 = vmatpush.bf16.msra.mxu0 %v575
    %687 = vmatpush.bf16.msra.mxu0 %v573
    %688 = vmatpush.bf16.msra.mxu0 %v571
    %689 = vmatpush.bf16.msra.mxu0 %v569
    %690 = vmatpush.bf16.msra.mxu0 %v567
    %691 = vmatpush.bf16.msra.mxu0 %v565
    %692 = vmatpush.bf16.msra.mxu0 %v563
    %693 = vmatmul.bf16.gmra.mxu0 %v267
    %v694 = vpop.f32.mrf.mxu0
    %v695 = vadd.f32 %v682, %v694
    %v696 = vpop.f32.mrf.mxu0
    %697 = vdwg.mxu0
    %698 = vmatpush.bf16.msra.mxu0 %v593
    %699 = vmatpush.bf16.msra.mxu0 %v591
    %700 = vmatpush.bf16.msra.mxu0 %v589
    %701 = vmatpush.bf16.msra.mxu0 %v587
    %702 = vmatpush.bf16.msra.mxu0 %v585
    %703 = vmatpush.bf16.msra.mxu0 %v583
    %704 = vmatpush.bf16.msra.mxu0 %v581
    %705 = vmatpush.bf16.msra.mxu0 %v579
    %706 = vmatmul.bf16.gmra.mxu0 %v268
    %v707 = vpop.f32.mrf.mxu0
    %v708 = vadd.f32 %v695, %v707
    %v709 = vpop.f32.mrf.mxu0
    %710 = vdwg.mxu0
    %711 = vmatpush.bf16.msra.mxu0 %v546
    %712 = vmatpush.bf16.msra.mxu0 %v544
    %713 = vmatpush.bf16.msra.mxu0 %v542
    %714 = vmatpush.bf16.msra.mxu0 %v540
    %715 = vmatpush.bf16.msra.mxu0 %v538
    %716 = vmatpush.bf16.msra.mxu0 %v536
    %717 = vmatpush.bf16.msra.mxu0 %v534
    %718 = vmatpush.bf16.msra.mxu0 %v532
    %719 = vmatmul.bf16.gmra.mxu0 %v265
    %v720 = vpop.f32.mrf.mxu0
    %v721 = vadd.f32 %v336, %v720
    %v722 = vpop.f32.mrf.mxu0
    %723 = vdwg.mxu0
    %724 = vmatpush.bf16.msra.mxu0 %v562
    %725 = vmatpush.bf16.msra.mxu0 %v560
    %726 = vmatpush.bf16.msra.mxu0 %v558
    %727 = vmatpush.bf16.msra.mxu0 %v556
    %728 = vmatpush.bf16.msra.mxu0 %v554
    %729 = vmatpush.bf16.msra.mxu0 %v552
    %730 = vmatpush.bf16.msra.mxu0 %v550
    %731 = vmatpush.bf16.msra.mxu0 %v548
    %732 = vmatmul.bf16.gmra.mxu0 %v266
    %v733 = vpop.f32.mrf.mxu0
    %v734 = vadd.f32 %v721, %v733
    %v735 = vpop.f32.mrf.mxu0
    %736 = vdwg.mxu0
    %737 = vmatpush.bf16.msra.mxu0 %v578
    %738 = vmatpush.bf16.msra.mxu0 %v576
    %739 = vmatpush.bf16.msra.mxu0 %v574
    %740 = vmatpush.bf16.msra.mxu0 %v572
    %741 = vmatpush.bf16.msra.mxu0 %v570
    %742 = vmatpush.bf16.msra.mxu0 %v568
    %743 = vmatpush.bf16.msra.mxu0 %v566
    %744 = vmatpush.bf16.msra.mxu0 %v564
    %745 = vmatmul.bf16.gmra.mxu0 %v267
    %v746 = vpop.f32.mrf.mxu0
    %v747 = vadd.f32 %v734, %v746
    %v748 = vpop.f32.mrf.mxu0
    %749 = vdwg.mxu0
    %750 = vmatpush.bf16.msra.mxu0 %v594
    %751 = vmatpush.bf16.msra.mxu0 %v592
    %752 = vmatpush.bf16.msra.mxu0 %v590
    %753 = vmatpush.bf16.msra.mxu0 %v588
    %754 = vmatpush.bf16.msra.mxu0 %v586
    %755 = vmatpush.bf16.msra.mxu0 %v584
    %756 = vmatpush.bf16.msra.mxu0 %v582
    %757 = vmatpush.bf16.msra.mxu0 %v580
    %758 = vmatmul.bf16.gmra.mxu0 %v268
    %v759 = vpop.f32.mrf.mxu0
    %v760 = vadd.f32 %v747, %v759
    %v761 = vpop.f32.mrf.mxu0
    %762 = vdwg.mxu0
    %v763 = vmax.f32 %v708, 0.0
    %v764 = vmax.f32 %v760, 0.0
    %v765 = vpack.c.bf16 %v763, %v763
    %v766 = vpack.c.bf16 %v764, %v764
    %v767 = vld [vmem:[#allocation10] sm:$0xf]
    %v768 = vld [vmem:[#allocation10 + $0x4] sm:$0xf]
    %v769 = vld [vmem:[#allocation10 + $0x8] sm:$0xf]
    %v770 = vld [vmem:[#allocation10 + $0xc] sm:$0xf]
    %v771 = vld [vmem:[#allocation10 + $0x10] sm:$0xf]
    %v772 = vld [vmem:[#allocation10 + $0x14] sm:$0xf]
    %v773 = vld [vmem:[#allocation10 + $0x18] sm:$0xf]
    %v774 = vld [vmem:[#allocation10 + $0x1c] sm:$0xf]
    %v775 = vld [vmem:[#allocation10 + $0x20] sm:$0xf]
    %v776 = vld [vmem:[#allocation10 + $0x24] sm:$0xf]
    %v777 = vld [vmem:[#allocation10 + $0x28] sm:$0xf]
    %v778 = vld [vmem:[#allocation10 + $0x2c] sm:$0xf]
    %v779 = vld [vmem:[#allocation10 + $0x30] sm:$0xf]
    %v780 = vld [vmem:[#allocation10 + $0x34] sm:$0xf]
    %v781 = vld [vmem:[#allocation10 + $0x38] sm:$0xf]
    %v782 = vld [vmem:[#allocation10 + $0x3c] sm:$0xf]
    %v783 = vld [vmem:[#allocation10 + $0x40] sm:$0xf]
    %v784 = vld [vmem:[#allocation10 + $0x44] sm:$0xf]
    %v785 = vld [vmem:[#allocation10 + $0x48] sm:$0xf]
    %v786 = vld [vmem:[#allocation10 + $0x4c] sm:$0xf]
    %v787 = vld [vmem:[#allocation10 + $0x50] sm:$0xf]
    %v788 = vld [vmem:[#allocation10 + $0x54] sm:$0xf]
    %v789 = vld [vmem:[#allocation10 + $0x58] sm:$0xf]
    %v790 = vld [vmem:[#allocation10 + $0x5c] sm:$0xf]
    %v791 = vld [vmem:[#allocation10 + $0x60] sm:$0xf]
    %v792 = vld [vmem:[#allocation10 + $0x64] sm:$0xf]
    %v793 = vld [vmem:[#allocation10 + $0x68] sm:$0xf]
    %v794 = vld [vmem:[#allocation10 + $0x6c] sm:$0xf]
    %v795 = vld [vmem:[#allocation10 + $0x70] sm:$0xf]
    %v796 = vld [vmem:[#allocation10 + $0x74] sm:$0xf]
    %v797 = vld [vmem:[#allocation10 + $0x78] sm:$0xf]
    %v798 = vld [vmem:[#allocation10 + $0x7c] sm:$0xf]
    %v799 = vld [vmem:[%s6] sm:$0x1]
    %v801 = vperm.slane %v799, 0
    %v835 = vunpack.c.l.b16 %v767
    %v836 = vunpack.c.l.b16 %v768
    %v837 = vunpack.c.l.b16 %v769
    %v838 = vunpack.c.l.b16 %v770
    %v839 = vunpack.c.l.b16 %v771
    %v840 = vunpack.c.l.b16 %v772
    %v841 = vunpack.c.l.b16 %v773
    %v842 = vunpack.c.l.b16 %v774
    %v843 = vunpack.c.l.b16 %v775
    %v844 = vunpack.c.l.b16 %v776
    %v845 = vunpack.c.l.b16 %v777
    %v846 = vunpack.c.l.b16 %v778
    %v847 = vunpack.c.l.b16 %v779
    %v848 = vunpack.c.l.b16 %v780
    %v849 = vunpack.c.l.b16 %v781
    %v850 = vunpack.c.l.b16 %v782
    %v851 = vunpack.c.l.b16 %v783
    %v852 = vunpack.c.l.b16 %v784
    %v853 = vunpack.c.l.b16 %v785
    %v854 = vunpack.c.l.b16 %v786
    %v855 = vunpack.c.l.b16 %v787
    %v856 = vunpack.c.l.b16 %v788
    %v857 = vunpack.c.l.b16 %v789
    %v858 = vunpack.c.l.b16 %v790
    %v859 = vunpack.c.l.b16 %v791
    %v860 = vunpack.c.l.b16 %v792
    %v861 = vunpack.c.l.b16 %v793
    %v862 = vunpack.c.l.b16 %v794
    %v863 = vunpack.c.l.b16 %v795
    %v864 = vunpack.c.l.b16 %v796
    %v865 = vunpack.c.l.b16 %v797
    %v866 = vunpack.c.l.b16 %v798
    %v867 = vpack.c.b16 %v836, %v835
    %v868 = vpack.c.b16 %v838, %v837
    %v869 = vpack.c.b16 %v840, %v839
    %v870 = vpack.c.b16 %v842, %v841
    %v871 = vpack.c.b16 %v844, %v843
    %v872 = vpack.c.b16 %v846, %v845
    %v873 = vpack.c.b16 %v848, %v847
    %v874 = vpack.c.b16 %v850, %v849
    %v875 = vpack.c.b16 %v852, %v851
    %v876 = vpack.c.b16 %v854, %v853
    %v877 = vpack.c.b16 %v856, %v855
    %v878 = vpack.c.b16 %v858, %v857
    %v879 = vpack.c.b16 %v860, %v859
    %v880 = vpack.c.b16 %v862, %v861
    %v881 = vpack.c.b16 %v864, %v863
    %v882 = vpack.c.b16 %v866, %v865
    %899 = vmatpush.bf16.msra.mxu0 %v874
    %900 = vmatpush.bf16.msra.mxu0 %v873
    %901 = vmatpush.bf16.msra.mxu0 %v872
    %902 = vmatpush.bf16.msra.mxu0 %v871
    %903 = vmatpush.bf16.msra.mxu0 %v870
    %904 = vmatpush.bf16.msra.mxu0 %v869
    %905 = vmatpush.bf16.msra.mxu0 %v868
    %906 = vmatpush.bf16.msra.mxu0 %v867
    %907 = vmatmul.bf16.gmra.mxu0 %v765
    %v908 = vpop.f32.mrf.mxu0
    %v909 = vadd.f32 %v801, %v908
    %v910 = vpop.f32.mrf.mxu0
    %911 = vdwg.mxu0
    %912 = vmatpush.bf16.msra.mxu0 %v882
    %913 = vmatpush.bf16.msra.mxu0 %v881
    %914 = vmatpush.bf16.msra.mxu0 %v880
    %915 = vmatpush.bf16.msra.mxu0 %v879
    %916 = vmatpush.bf16.msra.mxu0 %v878
    %917 = vmatpush.bf16.msra.mxu0 %v877
    %918 = vmatpush.bf16.msra.mxu0 %v876
    %919 = vmatpush.bf16.msra.mxu0 %v875
    %920 = vmatmul.bf16.gmra.mxu0 %v766
    %v921 = vpop.f32.mrf.mxu0
    %v922 = vadd.f32 %v909, %v921
    %v923 = vpop.f32.mrf.mxu0
    %924 = vdwg.mxu0
    %v925 = vmax.f32 %v922, 0.0
    %v926 = vpack.c.bf16 %v925, %v925
    %v927 = vld [vmem:[#allocation11] sm:$0xf]
    %v928 = vld [vmem:[#allocation11 + $0x4] sm:$0xf]
    %v929 = vld [vmem:[#allocation11 + $0x8] sm:$0xf]
    %v930 = vld [vmem:[#allocation11 + $0xc] sm:$0xf]
    %v931 = vld [vmem:[#allocation11 + $0x10] sm:$0xf]
    %v932 = vld [vmem:[#allocation11 + $0x14] sm:$0xf]
    %v933 = vld [vmem:[#allocation11 + $0x18] sm:$0xf]
    %v934 = vld [vmem:[#allocation11 + $0x1c] sm:$0xf]
    %v935 = vld [vmem:[#allocation11 + $0x20] sm:$0xf]
    %v936 = vld [vmem:[#allocation11 + $0x24] sm:$0xf]
    %v937 = vld [vmem:[#allocation11 + $0x28] sm:$0xf]
    %v938 = vld [vmem:[#allocation11 + $0x2c] sm:$0xf]
    %v939 = vld [vmem:[#allocation11 + $0x30] sm:$0xf]
    %v940 = vld [vmem:[#allocation11 + $0x34] sm:$0xf]
    %v941 = vld [vmem:[#allocation11 + $0x38] sm:$0xf]
    %v942 = vld [vmem:[#allocation11 + $0x3c] sm:$0xf]
    %v943 = vld [vmem:[%s8] sm:$0x1]
    %v945 = vperm.slane %v943, 0
    %v963 = vunpack.c.l.b16 %v927
    %v964 = vunpack.c.l.b16 %v928
    %v965 = vunpack.c.l.b16 %v929
    %v966 = vunpack.c.l.b16 %v930
    %v967 = vunpack.c.l.b16 %v931
    %v968 = vunpack.c.l.b16 %v932
    %v969 = vunpack.c.l.b16 %v933
    %v970 = vunpack.c.l.b16 %v934
    %v971 = vunpack.c.l.b16 %v935
    %v972 = vunpack.c.l.b16 %v936
    %v973 = vunpack.c.l.b16 %v937
    %v974 = vunpack.c.l.b16 %v938
    %v975 = vunpack.c.l.b16 %v939
    %v976 = vunpack.c.l.b16 %v940
    %v977 = vunpack.c.l.b16 %v941
    %v978 = vunpack.c.l.b16 %v942
    %v979 = vpack.c.b16 %v964, %v963
    %v980 = vpack.c.b16 %v966, %v965
    %v981 = vpack.c.b16 %v968, %v967
    %v982 = vpack.c.b16 %v970, %v969
    %v983 = vpack.c.b16 %v972, %v971
    %v984 = vpack.c.b16 %v974, %v973
    %v985 = vpack.c.b16 %v976, %v975
    %v986 = vpack.c.b16 %v978, %v977
    %995 = vmatpush.bf16.msra.mxu0 %v986
    %996 = vmatpush.bf16.msra.mxu0 %v985
    %997 = vmatpush.bf16.msra.mxu0 %v984
    %998 = vmatpush.bf16.msra.mxu0 %v983
    %999 = vmatpush.bf16.msra.mxu0 %v982
    %1000 = vmatpush.bf16.msra.mxu0 %v981
    %1001 = vmatpush.bf16.msra.mxu0 %v980
    %1002 = vmatpush.bf16.msra.mxu0 %v979
    %1003 = vmatmul.bf16.gmra.mxu0 %v926
    %v1004 = vpop.f32.mrf.mxu0
    %v1005 = vadd.f32 %v945, %v1004
    %v1006 = vpop.f32.mrf.mxu0
    %1007 = vdwg.mxu0
    %v1008 = vmax.f32 %v1005, 0.0
    %v1009 = vpack.c.bf16 %v1008, %v1008
    %v1010 = vld [vmem:[#allocation13] sm:$0xf]
    %v1011 = vld [vmem:[#allocation13 + $0x4] sm:$0xf]
    %v1012 = vld [vmem:[#allocation13 + $0x8] sm:$0xf]
    %v1013 = vld [vmem:[#allocation13 + $0xc] sm:$0xf]
    %v1014 = vld [vmem:[#allocation13 + $0x10] sm:$0xf]
    %v1015 = vld [vmem:[#allocation13 + $0x14] sm:$0xf]
    %v1016 = vld [vmem:[#allocation13 + $0x18] sm:$0xf]
    %v1017 = vld [vmem:[#allocation13 + $0x1c] sm:$0xf]
    %v1018 = vld [vmem:[#allocation13 + $0x20] sm:$0xf]
    %v1019 = vld [vmem:[#allocation13 + $0x24] sm:$0xf]
    %v1020 = vld [vmem:[#allocation13 + $0x28] sm:$0xf]
    %v1021 = vld [vmem:[#allocation13 + $0x2c] sm:$0xf]
    %v1022 = vld [vmem:[#allocation13 + $0x30] sm:$0xf]
    %v1023 = vld [vmem:[#allocation13 + $0x34] sm:$0xf]
    %v1024 = vld [vmem:[#allocation13 + $0x38] sm:$0xf]
    %v1025 = vld [vmem:[#allocation13 + $0x3c] sm:$0xf]
    %v1026 = vld [vmem:[%s10] sm:$0x1]
    %v1028 = vperm.slane %v1026, 0
    %v1046 = vunpack.c.l.b16 %v1010
    %v1047 = vunpack.c.l.b16 %v1011
    %v1048 = vunpack.c.l.b16 %v1012
    %v1049 = vunpack.c.l.b16 %v1013
    %v1050 = vunpack.c.l.b16 %v1014
    %v1051 = vunpack.c.l.b16 %v1015
    %v1052 = vunpack.c.l.b16 %v1016
    %v1053 = vunpack.c.l.b16 %v1017
    %v1054 = vunpack.c.l.b16 %v1018
    %v1055 = vunpack.c.l.b16 %v1019
    %v1056 = vunpack.c.l.b16 %v1020
    %v1057 = vunpack.c.l.b16 %v1021
    %v1058 = vunpack.c.l.b16 %v1022
    %v1059 = vunpack.c.l.b16 %v1023
    %v1060 = vunpack.c.l.b16 %v1024
    %v1061 = vunpack.c.l.b16 %v1025
    %v1062 = vpack.c.b16 %v1047, %v1046
    %v1063 = vpack.c.b16 %v1049, %v1048
    %v1064 = vpack.c.b16 %v1051, %v1050
    %v1065 = vpack.c.b16 %v1053, %v1052
    %v1066 = vpack.c.b16 %v1055, %v1054
    %v1067 = vpack.c.b16 %v1057, %v1056
    %v1068 = vpack.c.b16 %v1059, %v1058
    %v1069 = vpack.c.b16 %v1061, %v1060
    %1078 = vmatpush.bf16.msra.mxu0 %v1069
    %1079 = vmatpush.bf16.msra.mxu0 %v1068
    %1080 = vmatpush.bf16.msra.mxu0 %v1067
    %1081 = vmatpush.bf16.msra.mxu0 %v1066
    %1082 = vmatpush.bf16.msra.mxu0 %v1065
    %1083 = vmatpush.bf16.msra.mxu0 %v1064
    %1084 = vmatpush.bf16.msra.mxu0 %v1063
    %1085 = vmatpush.bf16.msra.mxu0 %v1062
    %1086 = vmatmul.bf16.gmra.mxu0 %v1009
    %v1087 = vpop.f32.mrf.mxu0
    %v1088 = vadd.f32 %v1028, %v1087
    %v1089 = vpop.f32.mrf.mxu0
    %1090 = vdwg.mxu0
    %v1091 = vtanh.pop %v1088
    %v1092 = vpack.c.bf16 %v1091, %v1091
    %1093 = vst [vmem:[#allocation14] sm:$0xf] %v1092
    // Predicated region
    $region74: #{tpu_custom_call.1} parent=1 // pred_check
      _
    $region75: #{tpu_custom_call.1} parent=1 // pred_check_branch
      %1095 = sbr.rel (0) target = $region77
    $region76: #{tpu_custom_call.1} parent=1 // pred_region
      %1097 = vsyncadd [#allocation4], 0
      %s1099 = sshll.u32 [#allocation14], 4
      %s1100 = int_to_ptr.vmem [resolvable:$true] %s1099
      %s1101 = sshll.u32 %s11, 4
      %s1102 = int_to_ptr.hbm [resolvable:$true] %s1101
      %1104 = dma.vmem_to_hbm [thread:$0]  %s1100, 64, %s1102, [#allocation4]
    $region77: #{tpu_custom_call.1} parent=1 // pred_fallthru
      _
    // Predicated region
    $region78: #{tpu_custom_call.1} parent=1 // pred_check
      _
    $region79: #{tpu_custom_call.1} parent=1 // pred_check_branch
      %1106 = sbr.rel (0) target = $region81
    $region80: #{tpu_custom_call.1} parent=1 // pred_region
      %1108 = dma.done [#allocation4], 64
    $region81: #{tpu_custom_call.1} parent=1 // pred_fallthru
      _
    %1109 = vsyncpa [#allocation3], 1
    %1110 = vsyncpa [#allocation6], 1
    %1111 = vsyncpa [#allocation9], 1
    %1112 = vsyncpa [#allocation12], 1
    %1113 = vsyncpa [#allocation4], 1

</llo_original>
